<compile_context>
chip_gen: v5e
topology: v5e:2x2
jax: 0.10.0
libtpu: 0.0.40
codegen_flags: <defaults>
</compile_context>

<pallas_src>
import jax
import jax.numpy as jnp
from jax.experimental import pallas as pl
from jax.experimental.pallas import tpu as pltpu

_HIDDEN = 512
_K_BLOCK = 2048          # feature-chunk size when K-splitting the first matmul
_K_SPLIT_MIN_F = 16384   # only K-split when resident bf16 w1 would exceed ~16 MiB


def _round_up(x, m):
    return ((x + m - 1) // m) * m


def _cdiv(a, b):
    return -(-a // b)


def _tpu_vmem_capacity_bytes():
    try:
        return int(pltpu.get_tpu_info().vmem_capacity_bytes)
    except Exception:
        return 64 * 1024 * 1024  # conservative (v7x per-TC) fallback


def _resident_spec(block_shape, index_map):
    """BlockSpec for a constant-index_map (resident) operand: single-buffered."""
    try:
        return pl.BlockSpec(block_shape, index_map, pipeline_mode=pl.Buffered(1))
    except TypeError:  # older API without pipeline_mode — fall back to default
        return pl.BlockSpec(block_shape, index_map)


# ----------------------------------------------------------------------------
# Kernels
# ----------------------------------------------------------------------------
def _ddi_kernel_fused(x_ref, w1_ref, b1_ref, wh_ref, bh_ref, out_ref):
    # shared_fc: Linear(input, 512) + ReLU (+ Dropout == identity in eval).
    # x arrives f32; cast to bf16 on the VPU right before the MXU, f32 accum.
    h = jnp.dot(x_ref[...].astype(jnp.bfloat16), w1_ref[...],
                preferred_element_type=jnp.float32)
    h = jnp.maximum(h + b1_ref[...], 0.0)
    # Fused heads: one (512, N_pad) lane-dense matmul covering risk|interaction.
    logits = jnp.dot(h.astype(jnp.bfloat16), wh_ref[...],
                     preferred_element_type=jnp.float32)
    out_ref[...] = logits + bh_ref[...]


def _ddi_kernel_ksplit(x_ref, w1_ref, b1_ref, wh_ref, bh_ref, out_ref, acc_ref):
    # Large-input_size path: reduce over feature chunks into an f32 accumulator.
    k = pl.program_id(1)

    @pl.when(k == 0)
    def _():
        acc_ref[...] = jnp.zeros_like(acc_ref)

    acc_ref[...] += jnp.dot(x_ref[...].astype(jnp.bfloat16), w1_ref[...],
                            preferred_element_type=jnp.float32)

    @pl.when(k == pl.num_programs(1) - 1)
    def _():
        h = jnp.maximum(acc_ref[...] + b1_ref[...], 0.0)
        logits = jnp.dot(h.astype(jnp.bfloat16), wh_ref[...],
                         preferred_element_type=jnp.float32)
        out_ref[...] = logits + bh_ref[...]


# ----------------------------------------------------------------------------
# Param preparation (one-time, outside the jitted forward)
# ----------------------------------------------------------------------------
def prepare_params(params):
    """Concat the two heads, pad to lane multiples, cast weights to bf16.

    Done once so the per-call forward issues no extra weight-traffic XLA ops.
    """
    w1, b1 = params["w1"], params["b1"]
    wr, br = params["wr"], params["br"]
    wi, bi = params["wi"], params["bi"]

    F, H = w1.shape
    n_risk, n_inter = wr.shape[1], wi.shape[1]
    n_total = n_risk + n_inter
    N_pad = _round_up(n_total, 128)

    # Pad the feature dim only when the K-split path will be used.
    F_w = _round_up(F, _K_BLOCK) if F > _K_SPLIT_MIN_F else F
    if F_w != F:
        w1 = jnp.pad(w1, ((0, F_w - F), (0, 0)))
    w1_p = w1.astype(jnp.bfloat16)

    wh = jnp.concatenate([wr, wi], axis=1)   # (H, n_total)
    bh = jnp.concatenate([br, bi], axis=1)   # (1, n_total)
    if N_pad != n_total:
        wh = jnp.pad(wh, ((0, 0), (0, N_pad - n_total)))
        bh = jnp.pad(bh, ((0, 0), (0, N_pad - n_total)))
    return {
        "w1": w1_p,                       # (F_w, H) bf16
        "b1": b1.astype(jnp.float32),     # (1, H)   f32
        "wh": wh.astype(jnp.bfloat16),    # (H, N_pad) bf16
        "bh": bh.astype(jnp.float32),     # (1, N_pad) f32
    }


# ----------------------------------------------------------------------------
# Forward
# ----------------------------------------------------------------------------
def multitask_ddi_forward(x, prep, *, n_risk, n_inter):
    """x: (B, input_size) f32.  Returns (risk_logits, interaction_logits) f32."""
    B, F_x = x.shape
    F_w, H = prep["w1"].shape
    N_pad = prep["wh"].shape[1]

    # --- K-split decision (large input_size only) ---------------------------
    if F_w > _K_SPLIT_MIN_F and F_w % _K_BLOCK == 0 and F_w // _K_BLOCK >= 2:
        grid_k, tk = F_w // _K_BLOCK, _K_BLOCK
    else:
        grid_k, tk = 1, F_w

    # --- per-generation VMEM budget -----------------------------------------
    bf16, f32 = 2, 4
    cap = _tpu_vmem_capacity_bytes() * 3 // 4     # headroom below physical VMEM
    w1_bufs = 1 if grid_k == 1 else 2             # resident vs. streamed chunks
    resident = (w1_bufs * tk * H * bf16           # w1
                + H * N_pad * bf16                # fused heads W (single buffer)
                + H * f32 + N_pad * f32)          # biases
    per_row = (2 * tk * f32                       # x tile, double-buffered, f32
               + 2 * N_pad * f32                  # out tile, double-buffered, f32
               + H * f32                          # accumulator / h
               + H * (f32 + bf16))                # relu / bf16(h) intermediates
    budget = int(cap * 0.85) - resident

    # --- batch tiling: multiple of 8, fits VMEM, feeds both v7x cores --------
    tile_b = max(8, min(2048, (budget // per_row) // 8 * 8))
    B_sub = _round_up(B, 8)
    tile_b = min(tile_b, B_sub)
    if B_sub > 8 and tile_b >= B_sub:
        tile_b = _round_up(_cdiv(B_sub, 2), 8)    # grid_b >= 2 for megacore
    tile_b = max(8, (tile_b // 8) * 8)
    B_pad = _round_up(B, tile_b)
    grid_b = B_pad // tile_b

    vmem_limit = int(min(cap, max(16 * 1024 * 1024,
                                  int((resident + tile_b * per_row) * 1.3))))

    # --- x: keep f32 (cast happens in-kernel); pad batch / features (zeros) --
    if x.dtype != jnp.float32:
        x = x.astype(jnp.float32)
    pad_b, pad_f = B_pad - B, F_w - F_x
    if pad_b or pad_f:
        x = jnp.pad(x, ((0, pad_b), (0, pad_f)))

    cost = pl.CostEstimate(
        flops=2 * B_pad * (F_w * H + H * N_pad),
        transcendentals=0,
        bytes_accessed=(B_pad * F_w * f32 + F_w * H * bf16 + H * N_pad * bf16
                        + H * f32 + N_pad * f32 + B_pad * N_pad * f32),
    )

    if grid_k == 1:
        kernel = _ddi_kernel_fused
        grid = (grid_b,)
        in_specs = [
            pl.BlockSpec((tile_b, tk), lambda i: (i, 0)),            # x (streamed)
            _resident_spec((tk, H), lambda i: (0, 0)),               # w1
            _resident_spec((1, H), lambda i: (0, 0)),                # b1
            _resident_spec((H, N_pad), lambda i: (0, 0)),            # heads W
            _resident_spec((1, N_pad), lambda i: (0, 0)),            # heads b
        ]
        out_specs = pl.BlockSpec((tile_b, N_pad), lambda i: (i, 0))
        scratch_shapes = []
        dim_sem = ("parallel",)
    else:
        kernel = _ddi_kernel_ksplit
        grid = (grid_b, grid_k)
        in_specs = [
            pl.BlockSpec((tile_b, tk), lambda i, k: (i, k)),         # x chunk
            pl.BlockSpec((tk, H), lambda i, k: (k, 0)),              # w1 chunk
            _resident_spec((1, H), lambda i, k: (0, 0)),             # b1
            _resident_spec((H, N_pad), lambda i, k: (0, 0)),         # heads W
            _resident_spec((1, N_pad), lambda i, k: (0, 0)),         # heads b
        ]
        out_specs = pl.BlockSpec((tile_b, N_pad), lambda i, k: (i, 0))
        scratch_shapes = [pltpu.VMEM((tile_b, H), jnp.float32)]
        dim_sem = ("parallel", "arbitrary")

    out = pl.pallas_call(
        kernel,
        out_shape=jax.ShapeDtypeStruct((B_pad, N_pad), jnp.float32),
        grid_spec=pltpu.PrefetchScalarGridSpec(
            num_scalar_prefetch=0,
            grid=grid,
            in_specs=in_specs,
            out_specs=out_specs,
            scratch_shapes=scratch_shapes,
        ),
        compiler_params=pltpu.CompilerParams(
            dimension_semantics=dim_sem,
            vmem_limit_bytes=vmem_limit,
        ),
        cost_estimate=cost,
    )(x, prep["w1"], prep["b1"], prep["wh"], prep["bh"])

    risk = out[:B, :n_risk]
    inter = out[:B, n_risk:n_risk + n_inter]
    return risk, inter


# ----------------------------------------------------------------------------
# Init & reference
# ----------------------------------------------------------------------------
def init_params(key, input_size, num_classes_risk, num_classes_interaction,
                hidden=_HIDDEN):
    """Deterministic synthetic params (PyTorch-like uniform fan-in init).

    Weights stored transposed to (in, out); biases as (1, out); all f32.
    """
    k1, k2, k3, k4, k5, k6 = jax.random.split(key, 6)

    def lin(kw, kb, fan_in, fan_out):
        bound = 1.0 / jnp.sqrt(fan_in)
        w = jax.random.uniform(kw, (fan_in, fan_out), jnp.float32, -bound, bound)
        b = jax.random.uniform(kb, (1, fan_out), jnp.float32, -bound, bound)
        return w, b

    w1, b1 = lin(k1, k2, input_size, hidden)
    wr, br = lin(k3, k4, hidden, num_classes_risk)
    wi, bi = lin(k5, k6, hidden, num_classes_interaction)
    return {"w1": w1, "b1": b1, "wr": wr, "br": br, "wi": wi, "bi": bi}


def reference_forward(x, params):
    """Plain-JAX reference with the same bf16-weight / f32-accum recipe."""
    xb = x.astype(jnp.bfloat16)
    w1b = params["w1"].astype(jnp.bfloat16)
    h = jnp.dot(xb, w1b, preferred_element_type=jnp.float32) + params["b1"]
    h = jnp.maximum(h, 0.0)
    hb = h.astype(jnp.bfloat16)
    risk = jnp.dot(hb, params["wr"].astype(jnp.bfloat16),
                   preferred_element_type=jnp.float32) + params["br"]
    inter = jnp.dot(hb, params["wi"].astype(jnp.bfloat16),
                    preferred_element_type=jnp.float32) + params["bi"]
    return risk, inter


if __name__ == "__main__":
    # Small shapes consistent with the module's forward.
    B = 2
    input_size = 32
    num_classes_risk = 4
    num_classes_interaction = 8

    key = jax.random.PRNGKey(0)
    kx, kp = jax.random.split(key)
    x = jax.random.normal(kx, (B, input_size), jnp.float32)
    params = init_params(kp, input_size, num_classes_risk,
                         num_classes_interaction)

    # One-time weight prep (concat heads, pad lanes, bf16 cast) outside jit.
    prep = jax.block_until_ready(prepare_params(params))

    fwd = jax.jit(multitask_ddi_forward, static_argnames=("n_risk", "n_inter"))
    risk, inter = fwd(x, prep, n_risk=num_classes_risk,
                      n_inter=num_classes_interaction)
    jax.block_until_ready((risk, inter))

    # Cross-check against a plain-JAX reference (same precision recipe).
    risk_ref, inter_ref = reference_forward(x, params)
    assert risk.shape == (B, num_classes_risk)
    assert inter.shape == (B, num_classes_interaction)
    assert jnp.allclose(risk, risk_ref, atol=2e-2, rtol=2e-2)
    assert jnp.allclose(inter, inter_ref, atol=2e-2, rtol=2e-2)

    print("KERNEL_OK")
</pallas_src>

<mosaic_0001>
module attributes {stable_mosaic.version = 11 : i64} {
  func.func @_ddi_kernel_fused(%arg0: i32, %arg1: memref<8x32xf32, #tpu.memory_space<vmem>>, %arg2: memref<32x512xbf16, #tpu.memory_space<vmem>>, %arg3: memref<1x512xf32, #tpu.memory_space<vmem>>, %arg4: memref<512x128xbf16, #tpu.memory_space<vmem>>, %arg5: memref<1x128xf32, #tpu.memory_space<vmem>>, %arg6: memref<8x128xf32, #tpu.memory_space<vmem>>) attributes {dimension_semantics = [#tpu.dimension_semantics<parallel>], iteration_bounds = array<i64: 1>, scalar_prefetch = 0 : i64, scratch_operands = 0 : i64, tpu.core_type = #tpu.core_type<tc>, window_params = [{transform_indices = @transform_0, window_bounds = array<i64: 8, 32>}, {pipeline_mode = #tpu.pipeline_mode<synchronous>, transform_indices = @transform_1, window_bounds = array<i64: 32, 512>}, {pipeline_mode = #tpu.pipeline_mode<synchronous>, transform_indices = @transform_2, window_bounds = array<i64: 1, 512>}, {pipeline_mode = #tpu.pipeline_mode<synchronous>, transform_indices = @transform_3, window_bounds = array<i64: 512, 128>}, {pipeline_mode = #tpu.pipeline_mode<synchronous>, transform_indices = @transform_4, window_bounds = array<i64: 1, 128>}, {transform_indices = @transform_5, window_bounds = array<i64: 8, 128>}]} {
    %c0 = arith.constant 0 : index
    %c0_0 = arith.constant 0 : index
    %0 = vector.load %arg1[%c0, %c0_0] : memref<8x32xf32, #tpu.memory_space<vmem>>, vector<8x32xf32>
    %1 = arith.truncf %0 : vector<8x32xf32> to vector<8x32xbf16>
    %c0_1 = arith.constant 0 : index
    %c0_2 = arith.constant 0 : index
    %2 = vector.load %arg2[%c0_1, %c0_2] : memref<32x512xbf16, #tpu.memory_space<vmem>>, vector<32x512xbf16>
    %cst = arith.constant dense<0.000000e+00> : vector<8x512xf32>
    %3 = tpu.matmul %1, %2, %cst {dimension_numbers = #tpu.dot_dimension_numbers<[1], [0], [0], [1], [0, 0, 1, 1], [], []>} : vector<8x32xbf16>, vector<32x512xbf16>, vector<8x512xf32> -> vector<8x512xf32>
    %c0_3 = arith.constant 0 : index
    %c0_4 = arith.constant 0 : index
    %4 = vector.load %arg3[%c0_3, %c0_4] : memref<1x512xf32, #tpu.memory_space<vmem>>, vector<1x512xf32>
    %5 = vector.broadcast %4 : vector<1x512xf32> to vector<8x512xf32>
    %6 = arith.addf %3, %5 : vector<8x512xf32>
    %cst_5 = arith.constant 0.000000e+00 : f32
    %7 = vector.broadcast %cst_5 : f32 to vector<8x512xf32>
    %8 = arith.maximumf %6, %7 : vector<8x512xf32>
    %9 = arith.truncf %8 : vector<8x512xf32> to vector<8x512xbf16>
    %c0_6 = arith.constant 0 : index
    %c0_7 = arith.constant 0 : index
    %10 = vector.load %arg4[%c0_6, %c0_7] : memref<512x128xbf16, #tpu.memory_space<vmem>>, vector<512x128xbf16>
    %cst_8 = arith.constant dense<0.000000e+00> : vector<8x128xf32>
    %11 = tpu.matmul %9, %10, %cst_8 {dimension_numbers = #tpu.dot_dimension_numbers<[1], [0], [0], [1], [0, 0, 1, 1], [], []>} : vector<8x512xbf16>, vector<512x128xbf16>, vector<8x128xf32> -> vector<8x128xf32>
    %c0_9 = arith.constant 0 : index
    %c0_10 = arith.constant 0 : index
    %12 = vector.load %arg5[%c0_9, %c0_10] : memref<1x128xf32, #tpu.memory_space<vmem>>, vector<1x128xf32>
    %13 = vector.broadcast %12 : vector<1x128xf32> to vector<8x128xf32>
    %14 = arith.addf %11, %13 : vector<8x128xf32>
    %c0_11 = arith.constant 0 : index
    %c0_12 = arith.constant 0 : index
    %15 = vector.load %arg6[%c0_11, %c0_12] : memref<8x128xf32, #tpu.memory_space<vmem>>, vector<8x128xf32>
    tpu.vector_store %arg6[%c0_11, %c0_12], %14 {strides = array<i32>} : memref<8x128xf32, #tpu.memory_space<vmem>>, vector<8x128xf32>,
    return
  }
  func.func @transform_0(%arg0: i32) -> (i32, i32) {
    %c0_i32 = arith.constant 0 : i32
    %c0_i32_0 = arith.constant 0 : i32
    return %arg0, %c0_i32 : i32, i32
  }
  func.func @transform_1(%arg0: i32) -> (i32, i32) {
    %c0_i32 = arith.constant 0 : i32
    %c0_i32_0 = arith.constant 0 : i32
    %c0_i32_1 = arith.constant 0 : i32
    return %c0_i32, %c0_i32_0 : i32, i32
  }
  func.func @transform_2(%arg0: i32) -> (i32, i32) {
    %c0_i32 = arith.constant 0 : i32
    %c0_i32_0 = arith.constant 0 : i32
    %c0_i32_1 = arith.constant 0 : i32
    return %c0_i32, %c0_i32_0 : i32, i32
  }
  func.func @transform_3(%arg0: i32) -> (i32, i32) {
    %c0_i32 = arith.constant 0 : i32
    %c0_i32_0 = arith.constant 0 : i32
    %c0_i32_1 = arith.constant 0 : i32
    return %c0_i32, %c0_i32_0 : i32, i32
  }
  func.func @transform_4(%arg0: i32) -> (i32, i32) {
    %c0_i32 = arith.constant 0 : i32
    %c0_i32_0 = arith.constant 0 : i32
    %c0_i32_1 = arith.constant 0 : i32
    return %c0_i32, %c0_i32_0 : i32, i32
  }
  func.func @transform_5(%arg0: i32) -> (i32, i32) {
    %c0_i32 = arith.constant 0 : i32
    %c0_i32_0 = arith.constant 0 : i32
    return %arg0, %c0_i32 : i32, i32
  }
}

</mosaic_0001>

<llo_original>
// kernel: multitask_ddi_forward.1
$region0: #{multitask_ddi_forward.1}
  #allocation0 [shape = 'u32[]', space=smem, size = 0x4, offset = 0x4, fixed_abs, tag = 'smem constant byte address 0x4 - core index']
  #allocation1 [shape = 'u32[72,128]{1,0:T(1,128)}', space=vmem, size = 0x9000, scoped, tag = 'internal scratch']
  %s0 = inlined_call_operand.vmem [shape: f32[8,32], index: 0, kind: input, shape index: {}]
  %s1 = inlined_call_operand.hbm [shape: bf16[32,512], index: 1, kind: input, shape index: {}]
  %s2 = inlined_call_operand.vmem [shape: f32[1,512], index: 2, kind: input, shape index: {}]
  %s3 = inlined_call_operand.hbm [shape: bf16[512,128], index: 3, kind: input, shape index: {}]
  %s4 = inlined_call_operand.vmem [shape: f32[1,128], index: 4, kind: input, shape index: {}]
  %s5 = inlined_call_operand.vmem [shape: f32[8,128], index: 5, kind: output, shape index: {}]
  %s6 = sld [smem:[#allocation0]]
  $region38: #{multitask_ddi_forward.1} parent=0
    _
  %s8 = ssub.s32 1, %s6
  %s9 = scalar_select 0, %s8, %s6
  $region1: #{multitask_ddi_forward.1} parent=0
    #allocation2 [shape = 'u8[32768]{0}', space=vmem, size = 0x8000, scoped, tag = 'input window, operand 1, single buffered']
    #allocation3 [shape = 's32[1]{0}', space=sflag, size = 0x4, scoped, tag = 'scoped memory for multitask_ddi_forward.1']
    #allocation4 [shape = 'u8[131072]{0}', space=vmem, size = 0x20000, scoped, tag = 'input window, operand 3, single buffered']
    #allocation5 [shape = 's32[1]{0}', space=sflag, size = 0x4, scoped, tag = 'scoped memory for multitask_ddi_forward.1']
    %10 = vsyncpa [#allocation3], 0
    %11 = vsyncpa [#allocation5], 0
    // Predicated region
    $region2: #{multitask_ddi_forward.1} parent=1 // pred_check
      _
    $region3: #{multitask_ddi_forward.1} parent=1 // pred_check_branch
      %13 = sbr.rel (0) target = $region5
    $region4: #{multitask_ddi_forward.1} parent=1 // pred_region
      _
    $region5: #{multitask_ddi_forward.1} parent=1 // pred_fallthru
      _
    // Predicated region
    $region6: #{multitask_ddi_forward.1} parent=1 // pred_check
      _
    $region7: #{multitask_ddi_forward.1} parent=1 // pred_check_branch
      %15 = sbr.rel (0) target = $region9
    $region8: #{multitask_ddi_forward.1} parent=1 // pred_region
      %17 = vsyncadd [#allocation3], 0
      %s18 = sshll.u32 %s1, 4
      %s19 = int_to_ptr.hbm [resolvable:$true] %s18
      %s20 = sshll.u32 [#allocation2], 4
      %s21 = int_to_ptr.vmem [resolvable:$true] %s20
      %26 = dma.hbm_to_vmem [thread:$0]  %s19, 1024, %s21, [#allocation3], 256, 256, 16
    $region9: #{multitask_ddi_forward.1} parent=1 // pred_fallthru
      _
    // Predicated region
    $region10: #{multitask_ddi_forward.1} parent=1 // pred_check
      _
    $region11: #{multitask_ddi_forward.1} parent=1 // pred_check_branch
      %28 = sbr.rel (0) target = $region13
    $region12: #{multitask_ddi_forward.1} parent=1 // pred_region
      _
    $region13: #{multitask_ddi_forward.1} parent=1 // pred_fallthru
      _
    // Predicated region
    $region14: #{multitask_ddi_forward.1} parent=1 // pred_check
      _
    $region15: #{multitask_ddi_forward.1} parent=1 // pred_check_branch
      %30 = sbr.rel (0) target = $region17
    $region16: #{multitask_ddi_forward.1} parent=1 // pred_region
      %32 = vsyncadd [#allocation5], 0
      %s33 = sshll.u32 %s3, 4
      %s34 = int_to_ptr.hbm [resolvable:$true] %s33
      %s35 = sshll.u32 [#allocation4], 4
      %s36 = int_to_ptr.vmem [resolvable:$true] %s35
      %41 = dma.hbm_to_vmem [thread:$0]  %s34, 4096, %s36, [#allocation5], 64, 64, 4
    $region17: #{multitask_ddi_forward.1} parent=1 // pred_fallthru
      _
    // Predicated region
    $region18: #{multitask_ddi_forward.1} parent=1 // pred_check
      _
    $region19: #{multitask_ddi_forward.1} parent=1 // pred_check_branch
      %43 = sbr.rel (0) target = $region21
    $region20: #{multitask_ddi_forward.1} parent=1 // pred_region
      _
    $region21: #{multitask_ddi_forward.1} parent=1 // pred_fallthru
      _
    // Predicated region
    $region22: #{multitask_ddi_forward.1} parent=1 // pred_check
      _
    $region23: #{multitask_ddi_forward.1} parent=1 // pred_check_branch
      %45 = sbr.rel (0) target = $region25
    $region24: #{multitask_ddi_forward.1} parent=1 // pred_region
      %47 = dma.done [#allocation3], 1024
    $region25: #{multitask_ddi_forward.1} parent=1 // pred_fallthru
      _
    // Predicated region
    $region26: #{multitask_ddi_forward.1} parent=1 // pred_check
      _
    $region27: #{multitask_ddi_forward.1} parent=1 // pred_check_branch
      %49 = sbr.rel (0) target = $region29
    $region28: #{multitask_ddi_forward.1} parent=1 // pred_region
      %51 = dma.done [#allocation5], 4096
    $region29: #{multitask_ddi_forward.1} parent=1 // pred_fallthru
      _
    %v53 = vld [vmem:[%s0] sm:$0xff]
    %v54 = vpack.c.bf16 %v53, %v53
    %v55 = vld [vmem:[#allocation2] sm:$0xff]
    %v56 = vld [vmem:[#allocation2 + $0x8] sm:$0xff]
    %v57 = vld [vmem:[#allocation2 + $0x10] sm:$0xff]
    %v58 = vld [vmem:[#allocation2 + $0x18] sm:$0xff]
    %v59 = vld [vmem:[#allocation2 + $0x20] sm:$0xff]
    %v60 = vld [vmem:[#allocation2 + $0x28] sm:$0xff]
    %v61 = vld [vmem:[#allocation2 + $0x30] sm:$0xff]
    %v62 = vld [vmem:[#allocation2 + $0x38] sm:$0xff]
    %v63 = vld [vmem:[%s2] sm:$0xf]
    %v65 = vperm.slane %v63, 0
    %v66 = vperm.slane %v63, 1
    %v67 = vperm.slane %v63, 2
    %v68 = vperm.slane %v63, 3
    %v81 = vunpack.c.l.b16 %v55
    %v82 = vunpack.c.h.b16 %v55
    %v83 = vunpack.c.l.b16 %v56
    %v84 = vunpack.c.h.b16 %v56
    %v85 = vunpack.c.l.b16 %v57
    %v86 = vunpack.c.h.b16 %v57
    %v87 = vunpack.c.l.b16 %v58
    %v88 = vunpack.c.h.b16 %v58
    %v89 = vunpack.c.l.b16 %v59
    %v90 = vunpack.c.h.b16 %v59
    %v91 = vunpack.c.l.b16 %v60
    %v92 = vunpack.c.h.b16 %v60
    %v93 = vunpack.c.l.b16 %v61
    %v94 = vunpack.c.h.b16 %v61
    %v95 = vunpack.c.l.b16 %v62
    %v96 = vunpack.c.h.b16 %v62
    %v97 = vpack.c.b16 %v85, %v81
    %v98 = vpack.c.b16 %v86, %v82
    %v99 = vpack.c.b16 %v87, %v83
    %v100 = vpack.c.b16 %v88, %v84
    %v101 = vpack.c.b16 %v93, %v89
    %v102 = vpack.c.b16 %v94, %v90
    %v103 = vpack.c.b16 %v95, %v91
    %v104 = vpack.c.b16 %v96, %v92
    %vm113 = vcmask 261120
    %v115 = vsel %vm113, %v54, 0
    %117 = vmatpush.bf16.msra.mxu0 0
    %118 = vmatpush.bf16.msra.mxu0 0
    %119 = vmatpush.bf16.msra.mxu0 0
    %120 = vmatpush.bf16.msra.mxu0 0
    %121 = vmatpush.bf16.msra.mxu0 0
    %122 = vmatpush.bf16.msra.mxu0 0
    %123 = vmatpush.bf16.msra.mxu0 %v101
    %124 = vmatpush.bf16.msra.mxu0 %v97
    %125 = vmatmul.bf16.gmra.mxu0 %v115
    %v126 = vpop.f32.mrf.mxu0
    %v127 = vadd.f32 %v65, %v126
    %v128 = vpop.f32.mrf.mxu0
    %129 = vdwg.mxu0
    %130 = vmatpush.bf16.msra.mxu0 0
    %131 = vmatpush.bf16.msra.mxu0 0
    %132 = vmatpush.bf16.msra.mxu0 0
    %133 = vmatpush.bf16.msra.mxu0 0
    %134 = vmatpush.bf16.msra.mxu0 0
    %135 = vmatpush.bf16.msra.mxu0 0
    %136 = vmatpush.bf16.msra.mxu0 %v102
    %137 = vmatpush.bf16.msra.mxu0 %v98
    %138 = vmatmul.bf16.gmra.mxu0 %v115
    %v139 = vpop.f32.mrf.mxu0
    %v140 = vadd.f32 %v66, %v139
    %v141 = vpop.f32.mrf.mxu0
    %142 = vdwg.mxu0
    %143 = vmatpush.bf16.msra.mxu0 0
    %144 = vmatpush.bf16.msra.mxu0 0
    %145 = vmatpush.bf16.msra.mxu0 0
    %146 = vmatpush.bf16.msra.mxu0 0
    %147 = vmatpush.bf16.msra.mxu0 0
    %148 = vmatpush.bf16.msra.mxu0 0
    %149 = vmatpush.bf16.msra.mxu0 %v103
    %150 = vmatpush.bf16.msra.mxu0 %v99
    %151 = vmatmul.bf16.gmra.mxu0 %v115
    %v152 = vpop.f32.mrf.mxu0
    %v153 = vadd.f32 %v67, %v152
    %v154 = vpop.f32.mrf.mxu0
    %155 = vdwg.mxu0
    %156 = vmatpush.bf16.msra.mxu0 0
    %157 = vmatpush.bf16.msra.mxu0 0
    %158 = vmatpush.bf16.msra.mxu0 0
    %159 = vmatpush.bf16.msra.mxu0 0
    %160 = vmatpush.bf16.msra.mxu0 0
    %161 = vmatpush.bf16.msra.mxu0 0
    %162 = vmatpush.bf16.msra.mxu0 %v104
    %163 = vmatpush.bf16.msra.mxu0 %v100
    %164 = vmatmul.bf16.gmra.mxu0 %v115
    %v165 = vpop.f32.mrf.mxu0
    %v166 = vadd.f32 %v68, %v165
    %v167 = vpop.f32.mrf.mxu0
    %168 = vdwg.mxu0
    %v169 = vmax.f32 %v127, 0.0
    %v170 = vmax.f32 %v140, 0.0
    %v171 = vmax.f32 %v153, 0.0
    %v172 = vmax.f32 %v166, 0.0
    %v173 = vpack.c.bf16 %v169, %v169
    %v174 = vpack.c.bf16 %v170, %v170
    %v175 = vpack.c.bf16 %v171, %v171
    %v176 = vpack.c.bf16 %v172, %v172
    %v177 = vld [vmem:[#allocation4] sm:$0xf]
    %v178 = vld [vmem:[#allocation4 + $0x4] sm:$0xf]
    %v179 = vld [vmem:[#allocation4 + $0x8] sm:$0xf]
    %v180 = vld [vmem:[#allocation4 + $0xc] sm:$0xf]
    %v181 = vld [vmem:[#allocation4 + $0x10] sm:$0xf]
    %v182 = vld [vmem:[#allocation4 + $0x14] sm:$0xf]
    %v183 = vld [vmem:[#allocation4 + $0x18] sm:$0xf]
    %v184 = vld [vmem:[#allocation4 + $0x1c] sm:$0xf]
    %v185 = vld [vmem:[#allocation4 + $0x20] sm:$0xf]
    %v186 = vld [vmem:[#allocation4 + $0x24] sm:$0xf]
    %v187 = vld [vmem:[#allocation4 + $0x28] sm:$0xf]
    %v188 = vld [vmem:[#allocation4 + $0x2c] sm:$0xf]
    %v189 = vld [vmem:[#allocation4 + $0x30] sm:$0xf]
    %v190 = vld [vmem:[#allocation4 + $0x34] sm:$0xf]
    %v191 = vld [vmem:[#allocation4 + $0x38] sm:$0xf]
    %v192 = vld [vmem:[#allocation4 + $0x3c] sm:$0xf]
    %v193 = vld [vmem:[#allocation4 + $0x40] sm:$0xf]
    %v194 = vld [vmem:[#allocation4 + $0x44] sm:$0xf]
    %v195 = vld [vmem:[#allocation4 + $0x48] sm:$0xf]
    %v196 = vld [vmem:[#allocation4 + $0x4c] sm:$0xf]
    %v197 = vld [vmem:[#allocation4 + $0x50] sm:$0xf]
    %v198 = vld [vmem:[#allocation4 + $0x54] sm:$0xf]
    %v199 = vld [vmem:[#allocation4 + $0x58] sm:$0xf]
    %v200 = vld [vmem:[#allocation4 + $0x5c] sm:$0xf]
    %v201 = vld [vmem:[#allocation4 + $0x60] sm:$0xf]
    %v202 = vld [vmem:[#allocation4 + $0x64] sm:$0xf]
    %v203 = vld [vmem:[#allocation4 + $0x68] sm:$0xf]
    %v204 = vld [vmem:[#allocation4 + $0x6c] sm:$0xf]
    %v205 = vld [vmem:[#allocation4 + $0x70] sm:$0xf]
    %v206 = vld [vmem:[#allocation4 + $0x74] sm:$0xf]
    %v207 = vld [vmem:[#allocation4 + $0x78] sm:$0xf]
    %v208 = vld [vmem:[#allocation4 + $0x7c] sm:$0xf]
    %v209 = vld [vmem:[#allocation4 + $0x80] sm:$0xf]
    %v210 = vld [vmem:[#allocation4 + $0x84] sm:$0xf]
    %v211 = vld [vmem:[#allocation4 + $0x88] sm:$0xf]
    %v212 = vld [vmem:[#allocation4 + $0x8c] sm:$0xf]
    %v213 = vld [vmem:[#allocation4 + $0x90] sm:$0xf]
    %v214 = vld [vmem:[#allocation4 + $0x94] sm:$0xf]
    %v215 = vld [vmem:[#allocation4 + $0x98] sm:$0xf]
    %v216 = vld [vmem:[#allocation4 + $0x9c] sm:$0xf]
    %v217 = vld [vmem:[#allocation4 + $0xa0] sm:$0xf]
    %v218 = vld [vmem:[#allocation4 + $0xa4] sm:$0xf]
    %v219 = vld [vmem:[#allocation4 + $0xa8] sm:$0xf]
    %v220 = vld [vmem:[#allocation4 + $0xac] sm:$0xf]
    %v221 = vld [vmem:[#allocation4 + $0xb0] sm:$0xf]
    %v222 = vld [vmem:[#allocation4 + $0xb4] sm:$0xf]
    %v223 = vld [vmem:[#allocation4 + $0xb8] sm:$0xf]
    %v224 = vld [vmem:[#allocation4 + $0xbc] sm:$0xf]
    %v225 = vld [vmem:[#allocation4 + $0xc0] sm:$0xf]
    %v226 = vld [vmem:[#allocation4 + $0xc4] sm:$0xf]
    %v227 = vld [vmem:[#allocation4 + $0xc8] sm:$0xf]
    %v228 = vld [vmem:[#allocation4 + $0xcc] sm:$0xf]
    %v229 = vld [vmem:[#allocation4 + $0xd0] sm:$0xf]
    %v230 = vld [vmem:[#allocation4 + $0xd4] sm:$0xf]
    %v231 = vld [vmem:[#allocation4 + $0xd8] sm:$0xf]
    %v232 = vld [vmem:[#allocation4 + $0xdc] sm:$0xf]
    %v233 = vld [vmem:[#allocation4 + $0xe0] sm:$0xf]
    %v234 = vld [vmem:[#allocation4 + $0xe4] sm:$0xf]
    %v235 = vld [vmem:[#allocation4 + $0xe8] sm:$0xf]
    %v236 = vld [vmem:[#allocation4 + $0xec] sm:$0xf]
    %v237 = vld [vmem:[#allocation4 + $0xf0] sm:$0xf]
    %v238 = vld [vmem:[#allocation4 + $0xf4] sm:$0xf]
    %v239 = vld [vmem:[#allocation4 + $0xf8] sm:$0xf]
    %v240 = vld [vmem:[#allocation4 + $0xfc] sm:$0xf]
    %v241 = vld [vmem:[%s4] sm:$0x1]
    %v243 = vperm.slane %v241, 0
    %v309 = vunpack.c.l.b16 %v177
    %v310 = vunpack.c.l.b16 %v178
    %v311 = vunpack.c.l.b16 %v179
    %v312 = vunpack.c.l.b16 %v180
    %v313 = vunpack.c.l.b16 %v181
    %v314 = vunpack.c.l.b16 %v182
    %v315 = vunpack.c.l.b16 %v183
    %v316 = vunpack.c.l.b16 %v184
    %v317 = vunpack.c.l.b16 %v185
    %v318 = vunpack.c.l.b16 %v186
    %v319 = vunpack.c.l.b16 %v187
    %v320 = vunpack.c.l.b16 %v188
    %v321 = vunpack.c.l.b16 %v189
    %v322 = vunpack.c.l.b16 %v190
    %v323 = vunpack.c.l.b16 %v191
    %v324 = vunpack.c.l.b16 %v192
    %v325 = vunpack.c.l.b16 %v193
    %v326 = vunpack.c.l.b16 %v194
    %v327 = vunpack.c.l.b16 %v195
    %v328 = vunpack.c.l.b16 %v196
    %v329 = vunpack.c.l.b16 %v197
    %v330 = vunpack.c.l.b16 %v198
    %v331 = vunpack.c.l.b16 %v199
    %v332 = vunpack.c.l.b16 %v200
    %v333 = vunpack.c.l.b16 %v201
    %v334 = vunpack.c.l.b16 %v202
    %v335 = vunpack.c.l.b16 %v203
    %v336 = vunpack.c.l.b16 %v204
    %v337 = vunpack.c.l.b16 %v205
    %v338 = vunpack.c.l.b16 %v206
    %v339 = vunpack.c.l.b16 %v207
    %v340 = vunpack.c.l.b16 %v208
    %v341 = vunpack.c.l.b16 %v209
    %v342 = vunpack.c.l.b16 %v210
    %v343 = vunpack.c.l.b16 %v211
    %v344 = vunpack.c.l.b16 %v212
    %v345 = vunpack.c.l.b16 %v213
    %v346 = vunpack.c.l.b16 %v214
    %v347 = vunpack.c.l.b16 %v215
    %v348 = vunpack.c.l.b16 %v216
    %v349 = vunpack.c.l.b16 %v217
    %v350 = vunpack.c.l.b16 %v218
    %v351 = vunpack.c.l.b16 %v219
    %v352 = vunpack.c.l.b16 %v220
    %v353 = vunpack.c.l.b16 %v221
    %v354 = vunpack.c.l.b16 %v222
    %v355 = vunpack.c.l.b16 %v223
    %v356 = vunpack.c.l.b16 %v224
    %v357 = vunpack.c.l.b16 %v225
    %v358 = vunpack.c.l.b16 %v226
    %v359 = vunpack.c.l.b16 %v227
    %v360 = vunpack.c.l.b16 %v228
    %v361 = vunpack.c.l.b16 %v229
    %v362 = vunpack.c.l.b16 %v230
    %v363 = vunpack.c.l.b16 %v231
    %v364 = vunpack.c.l.b16 %v232
    %v365 = vunpack.c.l.b16 %v233
    %v366 = vunpack.c.l.b16 %v234
    %v367 = vunpack.c.l.b16 %v235
    %v368 = vunpack.c.l.b16 %v236
    %v369 = vunpack.c.l.b16 %v237
    %v370 = vunpack.c.l.b16 %v238
    %v371 = vunpack.c.l.b16 %v239
    %v372 = vunpack.c.l.b16 %v240
    %v373 = vpack.c.b16 %v310, %v309
    %v374 = vpack.c.b16 %v312, %v311
    %v375 = vpack.c.b16 %v314, %v313
    %v376 = vpack.c.b16 %v316, %v315
    %v377 = vpack.c.b16 %v318, %v317
    %v378 = vpack.c.b16 %v320, %v319
    %v379 = vpack.c.b16 %v322, %v321
    %v380 = vpack.c.b16 %v324, %v323
    %v381 = vpack.c.b16 %v326, %v325
    %v382 = vpack.c.b16 %v328, %v327
    %v383 = vpack.c.b16 %v330, %v329
    %v384 = vpack.c.b16 %v332, %v331
    %v385 = vpack.c.b16 %v334, %v333
    %v386 = vpack.c.b16 %v336, %v335
    %v387 = vpack.c.b16 %v338, %v337
    %v388 = vpack.c.b16 %v340, %v339
    %v389 = vpack.c.b16 %v342, %v341
    %v390 = vpack.c.b16 %v344, %v343
    %v391 = vpack.c.b16 %v346, %v345
    %v392 = vpack.c.b16 %v348, %v347
    %v393 = vpack.c.b16 %v350, %v349
    %v394 = vpack.c.b16 %v352, %v351
    %v395 = vpack.c.b16 %v354, %v353
    %v396 = vpack.c.b16 %v356, %v355
    %v397 = vpack.c.b16 %v358, %v357
    %v398 = vpack.c.b16 %v360, %v359
    %v399 = vpack.c.b16 %v362, %v361
    %v400 = vpack.c.b16 %v364, %v363
    %v401 = vpack.c.b16 %v366, %v365
    %v402 = vpack.c.b16 %v368, %v367
    %v403 = vpack.c.b16 %v370, %v369
    %v404 = vpack.c.b16 %v372, %v371
    %437 = vmatpush.bf16.msra.mxu0 %v380
    %438 = vmatpush.bf16.msra.mxu0 %v379
    %439 = vmatpush.bf16.msra.mxu0 %v378
    %440 = vmatpush.bf16.msra.mxu0 %v377
    %441 = vmatpush.bf16.msra.mxu0 %v376
    %442 = vmatpush.bf16.msra.mxu0 %v375
    %443 = vmatpush.bf16.msra.mxu0 %v374
    %444 = vmatpush.bf16.msra.mxu0 %v373
    %445 = vmatmul.bf16.gmra.mxu0 %v173
    %v446 = vpop.f32.mrf.mxu0
    %v447 = vadd.f32 %v243, %v446
    %v448 = vpop.f32.mrf.mxu0
    %449 = vdwg.mxu0
    %450 = vmatpush.bf16.msra.mxu0 %v388
    %451 = vmatpush.bf16.msra.mxu0 %v387
    %452 = vmatpush.bf16.msra.mxu0 %v386
    %453 = vmatpush.bf16.msra.mxu0 %v385
    %454 = vmatpush.bf16.msra.mxu0 %v384
    %455 = vmatpush.bf16.msra.mxu0 %v383
    %456 = vmatpush.bf16.msra.mxu0 %v382
    %457 = vmatpush.bf16.msra.mxu0 %v381
    %458 = vmatmul.bf16.gmra.mxu0 %v174
    %v459 = vpop.f32.mrf.mxu0
    %v460 = vadd.f32 %v447, %v459
    %v461 = vpop.f32.mrf.mxu0
    %462 = vdwg.mxu0
    %463 = vmatpush.bf16.msra.mxu0 %v396
    %464 = vmatpush.bf16.msra.mxu0 %v395
    %465 = vmatpush.bf16.msra.mxu0 %v394
    %466 = vmatpush.bf16.msra.mxu0 %v393
    %467 = vmatpush.bf16.msra.mxu0 %v392
    %468 = vmatpush.bf16.msra.mxu0 %v391
    %469 = vmatpush.bf16.msra.mxu0 %v390
    %470 = vmatpush.bf16.msra.mxu0 %v389
    %471 = vmatmul.bf16.gmra.mxu0 %v175
    %v472 = vpop.f32.mrf.mxu0
    %v473 = vadd.f32 %v460, %v472
    %v474 = vpop.f32.mrf.mxu0
    %475 = vdwg.mxu0
    %476 = vmatpush.bf16.msra.mxu0 %v404
    %477 = vmatpush.bf16.msra.mxu0 %v403
    %478 = vmatpush.bf16.msra.mxu0 %v402
    %479 = vmatpush.bf16.msra.mxu0 %v401
    %480 = vmatpush.bf16.msra.mxu0 %v400
    %481 = vmatpush.bf16.msra.mxu0 %v399
    %482 = vmatpush.bf16.msra.mxu0 %v398
    %483 = vmatpush.bf16.msra.mxu0 %v397
    %484 = vmatmul.bf16.gmra.mxu0 %v176
    %v485 = vpop.f32.mrf.mxu0
    %v486 = vadd.f32 %v473, %v485
    %v487 = vpop.f32.mrf.mxu0
    %488 = vdwg.mxu0
    %489 = vst [vmem:[%s5] sm:$0xff] %v486
    // Predicated region
    $region30: #{multitask_ddi_forward.1} parent=1 // pred_check
      _
    $region31: #{multitask_ddi_forward.1} parent=1 // pred_check_branch
      %491 = sbr.rel (0) target = $region33
    $region32: #{multitask_ddi_forward.1} parent=1 // pred_region
      _
    $region33: #{multitask_ddi_forward.1} parent=1 // pred_fallthru
      _
    // Predicated region
    $region34: #{multitask_ddi_forward.1} parent=1 // pred_check
      _
    $region35: #{multitask_ddi_forward.1} parent=1 // pred_check_branch
      %493 = sbr.rel (0) target = $region37
    $region36: #{multitask_ddi_forward.1} parent=1 // pred_region
      _
    $region37: #{multitask_ddi_forward.1} parent=1 // pred_fallthru
      _
    %494 = vsyncpa [#allocation3], 1
    %495 = vsyncpa [#allocation5], 1

</llo_original>
